<compile_context>
chip_gen: v7x
topology: tpu7x:2x2x1
jax: 0.10.0
libtpu: 0.0.40
codegen_flags: <defaults>
</compile_context>

<pallas_src>
import functools

import jax
import jax.numpy as jnp
from jax.experimental import pallas as pl
from jax.experimental.pallas import tpu as pltpu

COMPUTE_DTYPE = jnp.bfloat16
VMEM_LIMIT = 64 * 1024 * 1024  # safe on v5e/v6e (128 MiB) and v7x (64 MiB)

# torchvision vgg16().features conv layers up to the last capture index (29):
#   (features index, C_in, C_out)
VGG16_CONV_CFG = [
    (0, 3, 64), (2, 64, 64),
    (5, 64, 128), (7, 128, 128),
    (10, 128, 256), (12, 256, 256), (14, 256, 256),
    (17, 256, 512), (19, 512, 512), (21, 512, 512),
    (24, 512, 512), (26, 512, 512), (28, 512, 512),
]
POOL_LAYERS = {4, 9, 16, 23}                       # MaxPool2d(2) indices < 29
CAPTURE_LAYERS = [1, 3, 6, 8, 11, 13, 15, 22, 29]  # ReLU outputs captured
# features[30] (final MaxPool) is never captured, so it is skipped — the
# returned feature list is identical to the PyTorch module's.


# ---------------------------------------------------------------------------
# Pallas kernels
# ---------------------------------------------------------------------------
def _norm_kernel(x_ref, scale_ref, shift_ref, o_ref):
    # Fused affine:  ((x + 1)/2 - mean)/std  ==  x * scale + shift
    o_ref[...] = x_ref[...] * scale_ref[...] + shift_ref[...]


def _conv3x3_relu_kernel(xp_ref, w_ref, b_ref, o_ref, acc_ref, *, h, w):
    # xp_ref : (1, h+2, w+2, tcin)   zero-padded input slab (bf16)
    # w_ref  : (3, 3, tcin, tcout)   weight tile (bf16), resident per (k, j)
    # b_ref  : (1, tcout)            bias (f32)
    # o_ref  : (1, h*w, tcout)       output rows for this image / Cout tile
    # acc_ref: (h*w, tcout) f32      VMEM scratch accumulator
    k = pl.program_id(2)  # Cin-reduction step (last grid axis, "arbitrary")

    @pl.when(k == 0)
    def _():
        acc_ref[...] = jnp.zeros_like(acc_ref)

    tcin = xp_ref.shape[-1]
    for ky in range(3):
        for kx in range(3):
            patch = xp_ref[:, ky:ky + h, kx:kx + w, :].reshape(h * w, tcin)
            acc_ref[...] += jnp.dot(patch, w_ref[ky, kx, :, :],
                                    preferred_element_type=jnp.float32)

    @pl.when(k == pl.num_programs(2) - 1)
    def _():
        res = jnp.maximum(acc_ref[...] + b_ref[...], 0.0).astype(o_ref.dtype)
        o_ref[...] = res.reshape(o_ref.shape)


def _max4_kernel(a_ref, b_ref, c_ref, d_ref, o_ref):
    # 2x2 max-pool reduction over the four window corners
    o_ref[...] = jnp.maximum(jnp.maximum(a_ref[...], b_ref[...]),
                             jnp.maximum(c_ref[...], d_ref[...]))


# ---------------------------------------------------------------------------
# Wrappers (glue)
# ---------------------------------------------------------------------------
def normalize(x_nhwc, scale, shift):
    n, h, w, c = x_nhwc.shape
    img_spec = pl.BlockSpec((1, h, w, c), lambda i: (i, 0, 0, 0))
    vec_spec = pl.BlockSpec((1, 1, 1, c), lambda i: (0, 0, 0, 0))
    return pl.pallas_call(
        _norm_kernel,
        out_shape=jax.ShapeDtypeStruct((n, h, w, c), jnp.float32),
        grid=(n,),
        in_specs=[img_spec, vec_spec, vec_spec],
        out_specs=img_spec,
        compiler_params=pltpu.CompilerParams(
            dimension_semantics=("parallel",),
            vmem_limit_bytes=VMEM_LIMIT),
    )(x_nhwc, scale, shift)


def conv3x3_relu(x_nhwc, w, b):
    # x: (N,H,W,Cin) bf16, w: (3,3,Cin,Cout) bf16, b: (1,Cout) f32 -> (N,H,W,Cout) bf16
    n, h, wd, cin = x_nhwc.shape
    cout = w.shape[-1]
    tcout = min(cout, 128)          # lane-sized Cout tiles
    tcin = min(cin, 256)            # Cin reduction chunks (512-ch layers -> 2 steps)
    n_cout = cout // tcout
    n_cin = cin // tcin
    m = h * wd

    # TODO(synk): the 1-pixel halo is still materialized via an XLA pad pass;
    # moving it in-kernel needs unaligned sublane stores / element-offset specs.
    xp = jnp.pad(x_nhwc, ((0, 0), (1, 1), (1, 1), (0, 0)))

    kernel = functools.partial(_conv3x3_relu_kernel, h=h, w=wd)
    out = pl.pallas_call(
        kernel,
        out_shape=jax.ShapeDtypeStruct((n, m, cout), COMPUTE_DTYPE),
        grid=(n, n_cout, n_cin),
        in_specs=[
            # input slab: constant over the Cout axis -> fetched once per (n, k)
            pl.BlockSpec((1, h + 2, wd + 2, tcin), lambda i, j, k: (i, 0, 0, k)),
            # weight tile: constant over the batch axis
            pl.BlockSpec((3, 3, tcin, tcout), lambda i, j, k: (0, 0, k, j)),
            pl.BlockSpec((1, tcout), lambda i, j, k: (0, j)),
        ],
        out_specs=pl.BlockSpec((1, m, tcout), lambda i, j, k: (i, 0, j)),
        scratch_shapes=[pltpu.VMEM((m, tcout), jnp.float32)],
        compiler_params=pltpu.CompilerParams(
            dimension_semantics=("parallel", "parallel", "arbitrary"),
            vmem_limit_bytes=VMEM_LIMIT),
    )(xp, w, b)
    return out.reshape(n, h, wd, cout)


def maxpool2x2(x_nhwc):
    # PyTorch MaxPool2d(2): floor division of odd spatial dims.
    n, h, w, c = x_nhwc.shape
    h2, w2 = h // 2, w // 2
    a = x_nhwc[:, 0:2 * h2:2, 0:2 * w2:2, :]
    b = x_nhwc[:, 0:2 * h2:2, 1:2 * w2:2, :]
    cc = x_nhwc[:, 1:2 * h2:2, 0:2 * w2:2, :]
    d = x_nhwc[:, 1:2 * h2:2, 1:2 * w2:2, :]
    spec = pl.BlockSpec((1, h2, w2, c), lambda i: (i, 0, 0, 0))
    return pl.pallas_call(
        _max4_kernel,
        out_shape=jax.ShapeDtypeStruct((n, h2, w2, c), x_nhwc.dtype),
        grid=(n,),
        in_specs=[spec] * 4,
        out_specs=spec,
        compiler_params=pltpu.CompilerParams(
            dimension_semantics=("parallel",),
            vmem_limit_bytes=VMEM_LIMIT),
    )(a, b, cc, d)


# ---------------------------------------------------------------------------
# Module
# ---------------------------------------------------------------------------
class Vgg16Extractor:
    """JAX/Pallas port of Vgg16_Extractor.forward (synthetic deterministic weights)."""

    def __init__(self, space="uniform", seed=42):
        self.space = space
        key = jax.random.PRNGKey(seed)
        self.params = {}
        # TODO(synk): pretrained torchvision weights are not available in-script;
        # deterministic He-style init stands in for them (same structure/dtypes).
        for idx, cin, cout in VGG16_CONV_CFG:
            key, kw, kb = jax.random.split(key, 3)
            std = (2.0 / (cin * 9)) ** 0.5
            w = jax.random.normal(kw, (3, 3, cin, cout), jnp.float32) * std
            b = jax.random.normal(kb, (cout,), jnp.float32) * 0.01
            self.params[idx] = (w.astype(COMPUTE_DTYPE), b.reshape(1, cout))
        mean = jnp.array([0.485, 0.456, 0.406], jnp.float32)
        std = jnp.array([0.229, 0.224, 0.225], jnp.float32)
        # ((x+1)/2 - mean)/std  ==  x*scale + shift  (multiply, not divide)
        self.norm_scale = (0.5 / std).reshape(1, 1, 1, 3)
        self.norm_shift = ((0.5 - mean) / std).reshape(1, 1, 1, 3)

    def __call__(self, x_nchw):
        # NCHW in/out (PyTorch convention); kernels run NHWC internally.
        x = jnp.transpose(x_nchw, (0, 2, 3, 1)).astype(jnp.float32)
        if self.space != "vgg":
            x = normalize(x, self.norm_scale, self.norm_shift)
        feat_nhwc = [x]                        # feat[0] kept in float32
        act = x.astype(COMPUTE_DTYPE)          # bf16 activation chain
        layer = 0
        last = max(CAPTURE_LAYERS)
        while layer <= last:
            if layer in self.params:           # Conv2d at `layer` + ReLU at `layer+1`
                w, b = self.params[layer]
                act = conv3x3_relu(act, w, b)
                if layer + 1 in CAPTURE_LAYERS:
                    feat_nhwc.append(act)
                layer += 2
            elif layer in POOL_LAYERS:         # MaxPool2d(kernel=2, stride=2)
                act = maxpool2x2(act)
                layer += 1
            else:
                layer += 1
        # Return NCHW float32 feature maps, like the torch module's `feat` list.
        return [jnp.transpose(f.astype(jnp.float32), (0, 3, 1, 2)) for f in feat_nhwc]

    # TODO(synk): forward_samples_hypercolumn uses host-side numpy shuffling /
    # fancy indexing and is not part of forward(); not ported to Pallas.


if __name__ == "__main__":
    key = jax.random.PRNGKey(0)
    # batch=2, 3 input channels (required by ImageNet normalization), 16x16
    x = jax.random.uniform(key, (2, 3, 16, 16), jnp.float32, minval=-1.0, maxval=1.0)

    model = Vgg16Extractor(space="uniform")
    feats = model(x)
    feats = jax.block_until_ready(feats)

    expected_channels = [3, 64, 64, 128, 128, 256, 256, 256, 512, 512]
    expected_spatial = [16, 16, 16, 8, 8, 4, 4, 4, 2, 1]
    assert len(feats) == 10
    for f, c, s in zip(feats, expected_channels, expected_spatial):
        assert f.shape == (2, c, s, s), f.shape
        assert f.dtype == jnp.float32
        assert bool(jnp.all(jnp.isfinite(f)))

    print("KERNEL_OK")
</pallas_src>

<mosaic_0001>
module attributes {stable_mosaic.version = 11 : i64} {
  func.func @_norm_kernel(%arg0: i32, %arg1: memref<1x16x16x3xf32, #tpu.memory_space<vmem>>, %arg2: memref<1x1x1x3xf32, #tpu.memory_space<vmem>>, %arg3: memref<1x1x1x3xf32, #tpu.memory_space<vmem>>, %arg4: memref<1x16x16x3xf32, #tpu.memory_space<vmem>>) attributes {dimension_semantics = [#tpu.dimension_semantics<parallel>], iteration_bounds = array<i64: 2>, scalar_prefetch = 0 : i64, scratch_operands = 0 : i64, tpu.core_type = #tpu.core_type<tc>, window_params = [{transform_indices = @transform_0, window_bounds = array<i64: 1, 16, 16, 3>}, {pipeline_mode = #tpu.pipeline_mode<synchronous>, transform_indices = @transform_1, window_bounds = array<i64: 1, 1, 1, 3>}, {pipeline_mode = #tpu.pipeline_mode<synchronous>, transform_indices = @transform_2, window_bounds = array<i64: 1, 1, 1, 3>}, {transform_indices = @transform_3, window_bounds = array<i64: 1, 16, 16, 3>}]} {
    %c0 = arith.constant 0 : index
    %c0_0 = arith.constant 0 : index
    %c0_1 = arith.constant 0 : index
    %c0_2 = arith.constant 0 : index
    %0 = vector.load %arg1[%c0, %c0_0, %c0_1, %c0_2] : memref<1x16x16x3xf32, #tpu.memory_space<vmem>>, vector<1x16x16x3xf32>
    %c0_3 = arith.constant 0 : index
    %c0_4 = arith.constant 0 : index
    %c0_5 = arith.constant 0 : index
    %c0_6 = arith.constant 0 : index
    %1 = vector.load %arg2[%c0_3, %c0_4, %c0_5, %c0_6] : memref<1x1x1x3xf32, #tpu.memory_space<vmem>>, vector<1x1x1x3xf32>
    %2 = vector.broadcast %1 : vector<1x1x1x3xf32> to vector<1x16x16x3xf32>
    %3 = arith.mulf %0, %2 : vector<1x16x16x3xf32>
    %c0_7 = arith.constant 0 : index
    %c0_8 = arith.constant 0 : index
    %c0_9 = arith.constant 0 : index
    %c0_10 = arith.constant 0 : index
    %4 = vector.load %arg3[%c0_7, %c0_8, %c0_9, %c0_10] : memref<1x1x1x3xf32, #tpu.memory_space<vmem>>, vector<1x1x1x3xf32>
    %5 = vector.broadcast %4 : vector<1x1x1x3xf32> to vector<1x16x16x3xf32>
    %6 = arith.addf %3, %5 : vector<1x16x16x3xf32>
    %c0_11 = arith.constant 0 : index
    %c0_12 = arith.constant 0 : index
    %c0_13 = arith.constant 0 : index
    %c0_14 = arith.constant 0 : index
    %7 = vector.load %arg4[%c0_11, %c0_12, %c0_13, %c0_14] : memref<1x16x16x3xf32, #tpu.memory_space<vmem>>, vector<1x16x16x3xf32>
    tpu.vector_store %arg4[%c0_11, %c0_12, %c0_13, %c0_14], %6 {strides = array<i32>} : memref<1x16x16x3xf32, #tpu.memory_space<vmem>>, vector<1x16x16x3xf32>,
    return
  }
  func.func @transform_0(%arg0: i32) -> (i32, i32, i32, i32) {
    %c0_i32 = arith.constant 0 : i32
    %c0_i32_0 = arith.constant 0 : i32
    %c0_i32_1 = arith.constant 0 : i32
    %c0_i32_2 = arith.constant 0 : i32
    return %arg0, %c0_i32, %c0_i32_0, %c0_i32_1 : i32, i32, i32, i32
  }
  func.func @transform_1(%arg0: i32) -> (i32, i32, i32, i32) {
    %c0_i32 = arith.constant 0 : i32
    %c0_i32_0 = arith.constant 0 : i32
    %c0_i32_1 = arith.constant 0 : i32
    %c0_i32_2 = arith.constant 0 : i32
    %c0_i32_3 = arith.constant 0 : i32
    return %c0_i32, %c0_i32_0, %c0_i32_1, %c0_i32_2 : i32, i32, i32, i32
  }
  func.func @transform_2(%arg0: i32) -> (i32, i32, i32, i32) {
    %c0_i32 = arith.constant 0 : i32
    %c0_i32_0 = arith.constant 0 : i32
    %c0_i32_1 = arith.constant 0 : i32
    %c0_i32_2 = arith.constant 0 : i32
    %c0_i32_3 = arith.constant 0 : i32
    return %c0_i32, %c0_i32_0, %c0_i32_1, %c0_i32_2 : i32, i32, i32, i32
  }
  func.func @transform_3(%arg0: i32) -> (i32, i32, i32, i32) {
    %c0_i32 = arith.constant 0 : i32
    %c0_i32_0 = arith.constant 0 : i32
    %c0_i32_1 = arith.constant 0 : i32
    %c0_i32_2 = arith.constant 0 : i32
    return %arg0, %c0_i32, %c0_i32_0, %c0_i32_1 : i32, i32, i32, i32
  }
}

</mosaic_0001>

<llo_original>
// kernel: tpu_custom_call.1
$region0: #{tpu_custom_call.1}
  #allocation0 [shape = 'u32[]', space=smem, size = 0x4, offset = 0x4, fixed_abs, tag = 'smem constant byte address 0x4 - core index']
  #allocation1 [shape = 'u32[144,128]{1,0:T(1,128)}', space=vmem, size = 0x12000, scoped, tag = 'internal scratch']
  %s0 = inlined_call_operand.hbm [shape: f32[2,16,16,3], index: 0, kind: input, shape index: {}]
  %s1 = inlined_call_operand.hbm [shape: f32[1,1,1,3], index: 1, kind: input, shape index: {}]
  %s2 = inlined_call_operand.hbm [shape: f32[1,1,1,3], index: 2, kind: input, shape index: {}]
  %s3 = inlined_call_operand.hbm [shape: f32[2,16,16,3], index: 3, kind: output, shape index: {}]
  %s4 = sld [smem:[#allocation0]]
  $region57: #{tpu_custom_call.1} parent=0
    _
  %s6 = ssub.s32 1, %s4
  %s7 = scalar_select 0, %s6, %s4
  $region1: #{tpu_custom_call.1} parent=0
    #allocation2 [shape = 'u8[262144]{0}', space=vmem, size = 0x40000, scoped, tag = 'input window, operand 0']
    #allocation3 [shape = 's32[2]{0}', space=sflag, size = 0x8, scoped, tag = 'scoped memory for tpu_custom_call.1']
    #allocation4 [shape = 's32[2]{0}', space=sflag, size = 0x8, scoped, tag = 'scoped memory for tpu_custom_call.1']
    #allocation5 [shape = 'u8[512]{0}', space=vmem, size = 0x400, scoped, tag = 'input window, operand 1, single buffered']
    #allocation6 [shape = 's32[1]{0}', space=sflag, size = 0x4, scoped, tag = 'scoped memory for tpu_custom_call.1']
    #allocation7 [shape = 'u8[512]{0}', space=vmem, size = 0x400, scoped, tag = 'input window, operand 2, single buffered']
    #allocation8 [shape = 'u8[262144]{0}', space=vmem, size = 0x40000, scoped, tag = 'output window, operand 0']
    %8 = vsyncpa [#allocation3], 0
    %s9 = scalar_lea.sflag [#allocation3], 1
    %10 = vsyncpa %s9, 0
    %11 = vsyncpa [#allocation6], 0
    %12 = vsyncpa [#allocation4], 0
    %s13 = scalar_lea.sflag [#allocation4], 1
    %14 = vsyncpa %s13, 0
    loop: start=0, step=1, limit=4
    $region2: #{tpu_custom_call.1} parent=1 // loop_pre_header
      _
    $region3: #{tpu_custom_call.1} parent=1 // loop_header
      %s16 = sphi 0, %s20
      %p17 = scmp.ge.s32.totalorder %s16, 4
      %s26 = sphi 0, %s28
      %s29 = sphi 0, %s26
      %s30 = sphi 0, %s29
      %s46 = sphi 0, %s30
      %s50 = sphi 0, %s50
      %s52 = sphi 0, %s50
      %s53 = sphi 0, %s52
      %s67 = sphi 0, %s53
      %s71 = sphi 0, %s71
      %s73 = sphi 0, %s71
      %s74 = sphi 0, %s73
      %s88 = sphi 0, %s74
      %s94 = sphi 0, %s96
      %s97 = sphi 0, %s94
      %s98 = sphi 0, %s97
      %s114 = sphi 0, %s98
    $region4: #{tpu_custom_call.1} parent=1 // loop_header_branch
      %19 = sbr.rel (%p17) target = $region8
    $region5: #{tpu_custom_call.1} parent=1 // loop_body
      %s21 = ssub.s32 %s16, 1
      %s22 = ssub.s32 %s16, 2
      %s23 = sadd.s32 %s16, 1
      %s24 = ssub.s32 %s16, %s23
      %p25 = scmp.eq.s32.totalorder %s24, 0
      %s27 = sadd.s32 %s26, 1
      %s28 = scalar_select %p25, %s26, %s27
      %p31 = pneg %p25
      %p32 = scmp.eq.s32.totalorder %s16, 1
      %p33 = por %p31, %p32
      %p34 = scmp.ne.s32.totalorder %s26, %s29
      %p35 = scmp.eq.s32.totalorder %s16, 0
      %p36 = por %p34, %p35
      %p37 = scmp.ne.s32.totalorder %s26, %s29
      %p38 = scmp.eq.s32.totalorder %s21, 1
      %p39 = por %p37, %p38
      %p40 = scmp.ne.s32.totalorder %s29, %s30
      %p41 = scmp.eq.s32.totalorder %s21, 0
      %p42 = por %p40, %p41
      %p43 = scmp.ne.s32.totalorder %s29, %s30
      %p44 = scmp.eq.s32.totalorder %s22, 1
      %p45 = por %p43, %p44
      %p47 = scmp.ne.s32.totalorder %s30, %s46
      %p48 = scmp.eq.s32.totalorder %s22, 0
      %p49 = por %p47, %p48
      %s51 = sadd.s32 %s50, 1
      %p54 = scmp.eq.s32.totalorder %s16, 1
      %p55 = scmp.ne.s32.totalorder %s50, %s52
      %p56 = scmp.eq.s32.totalorder %s16, 0
      %p57 = por %p55, %p56
      %p58 = scmp.ne.s32.totalorder %s50, %s52
      %p59 = scmp.eq.s32.totalorder %s21, 1
      %p60 = por %p58, %p59
      %p61 = scmp.ne.s32.totalorder %s52, %s53
      %p62 = scmp.eq.s32.totalorder %s21, 0
      %p63 = por %p61, %p62
      %p64 = scmp.ne.s32.totalorder %s52, %s53
      %p65 = scmp.eq.s32.totalorder %s22, 1
      %p66 = por %p64, %p65
      %p68 = scmp.ne.s32.totalorder %s53, %s67
      %p69 = scmp.eq.s32.totalorder %s22, 0
      %p70 = por %p68, %p69
      %s72 = sadd.s32 %s71, 1
      %p75 = scmp.eq.s32.totalorder %s16, 1
      %p76 = scmp.ne.s32.totalorder %s71, %s73
      %p77 = scmp.eq.s32.totalorder %s16, 0
      %p78 = por %p76, %p77
      %p79 = scmp.ne.s32.totalorder %s71, %s73
      %p80 = scmp.eq.s32.totalorder %s21, 1
      %p81 = por %p79, %p80
      %p82 = scmp.ne.s32.totalorder %s73, %s74
      %p83 = scmp.eq.s32.totalorder %s21, 0
      %p84 = por %p82, %p83
      %p85 = scmp.ne.s32.totalorder %s73, %s74
      %p86 = scmp.eq.s32.totalorder %s22, 1
      %p87 = por %p85, %p86
      %p89 = scmp.ne.s32.totalorder %s74, %s88
      %p90 = scmp.eq.s32.totalorder %s22, 0
      %p91 = por %p89, %p90
      %s92 = ssub.s32 %s16, %s23
      %p93 = scmp.eq.s32.totalorder %s92, 0
      %s95 = sadd.s32 %s94, 1
      %s96 = scalar_select %p93, %s94, %s95
      %p99 = pneg %p93
      %p100 = scmp.eq.s32.totalorder %s16, 1
      %p101 = por %p99, %p100
      %p102 = scmp.ne.s32.totalorder %s94, %s97
      %p103 = scmp.eq.s32.totalorder %s16, 0
      %p104 = por %p102, %p103
      %p105 = scmp.ne.s32.totalorder %s94, %s97
      %p106 = scmp.eq.s32.totalorder %s21, 1
      %p107 = por %p105, %p106
      %p108 = scmp.ne.s32.totalorder %s97, %s98
      %p109 = scmp.eq.s32.totalorder %s21, 0
      %p110 = por %p108, %p109
      %p111 = scmp.ne.s32.totalorder %s97, %s98
      %p112 = scmp.eq.s32.totalorder %s22, 1
      %p113 = por %p111, %p112
      %p115 = scmp.ne.s32.totalorder %s98, %s114
      %p116 = scmp.eq.s32.totalorder %s22, 0
      %p117 = por %p115, %p116
      %p118 = scmp.le.s32.totalorder 1, %s16
      %p119 = scmp.lt.s32.totalorder %s16, 3
      %p120 = pnand %p118, %p119
      %p121 = pneg %p120
      // Predicated region
      $region9: #{tpu_custom_call.1} parent=5 // pred_check
        _
      $region10: #{tpu_custom_call.1} parent=5 // pred_check_branch
        %123 = sbr.rel (%p120) target = $region12
      $region11: #{tpu_custom_call.1} parent=5 // pred_region
        %s124 = ssub.s32 %s16, 1
        // Predicated region
        $region13: #{tpu_custom_call.1} parent=11 // pred_check
          %p125 = pneg %p63
        $region14: #{tpu_custom_call.1} parent=11 // pred_check_branch
          %127 = sbr.rel (%p125) target = $region16
        $region15: #{tpu_custom_call.1} parent=11 // pred_region
          %s129 = ssub.s32 16, 16
          %130 = vsyncadd [#allocation6], %s129
          %s132 = sshll.u32 [#allocation5], 4
          %s133 = int_to_ptr.vmem [resolvable:$true] %s132
          %135 = dma.hbm_to_vmem [thread:$0]  %s1, 16, %s133, [#allocation6]
        $region16: #{tpu_custom_call.1} parent=11 // pred_fallthru
          _
        // Predicated region
        $region17: #{tpu_custom_call.1} parent=11 // pred_check
          %p136 = pneg %p84
        $region18: #{tpu_custom_call.1} parent=11 // pred_check_branch
          %138 = sbr.rel (%p136) target = $region20
        $region19: #{tpu_custom_call.1} parent=11 // pred_region
          %s140 = ssub.s32 16, 16
          %141 = vsyncadd [#allocation6], %s140
          %s143 = sshll.u32 [#allocation7], 4
          %s144 = int_to_ptr.vmem [resolvable:$true] %s143
          %146 = dma.hbm_to_vmem [thread:$0]  %s2, 16, %s144, [#allocation6]
        $region20: #{tpu_custom_call.1} parent=11 // pred_fallthru
          _
      $region12: #{tpu_custom_call.1} parent=5 // pred_fallthru
        _
      %p147 = scmp.lt.s32.totalorder %s16, 2
      // Predicated region
      $region21: #{tpu_custom_call.1} parent=5 // pred_check
        %p148 = pneg %p147
      $region22: #{tpu_custom_call.1} parent=5 // pred_check_branch
        %150 = sbr.rel (%p148) target = $region24
      $region23: #{tpu_custom_call.1} parent=5 // pred_region
        // Predicated region
        $region25: #{tpu_custom_call.1} parent=23 // pred_check
          %p151 = pneg %p36
        $region26: #{tpu_custom_call.1} parent=23 // pred_check_branch
          %153 = sbr.rel (%p151) target = $region28
        $region27: #{tpu_custom_call.1} parent=23 // pred_region
          %s154 = sand.u32 %s26, 1
          %s155 = scalar_lea.sflag [#allocation3], %s154
          %s156 = sand.u32 %s26, 1
          %s157 = smul.addr %s156, 256
          %s158 = scalar_lea.vmem [#allocation2], %s157
          %s160 = ssub.s32 4096, 4096
          %161 = vsyncadd %s155, %s160
          %s162 = smul.addr %s16, 32
          %s163 = smul.addr %s162, 128
          %s164 = scalar_lea.hbm %s0, %s163
          %s165 = sshll.u32 %s158, 4
          %s166 = int_to_ptr.vmem [resolvable:$true] %s165
          %171 = dma.hbm_to_vmem [thread:$0]  %s164, 4096, %s166, %s155, 128, 128, 8
        $region28: #{tpu_custom_call.1} parent=23 // pred_fallthru
          _
      $region24: #{tpu_custom_call.1} parent=5 // pred_fallthru
        _
      %p172 = scmp.le.s32.totalorder 1, %s16
      %p173 = scmp.lt.s32.totalorder %s16, 3
      %p174 = pnand %p172, %p173
      %p175 = pneg %p174
      // Predicated region
      $region29: #{tpu_custom_call.1} parent=5 // pred_check
        _
      $region30: #{tpu_custom_call.1} parent=5 // pred_check_branch
        %177 = sbr.rel (%p174) target = $region32
      $region31: #{tpu_custom_call.1} parent=5 // pred_region
        %s178 = ssub.s32 %s16, 1
        %s179 = sand.u32 %s29, 1
        %s180 = scalar_lea.sflag [#allocation3], %s179
        %s181 = sand.u32 %s29, 1
        %s182 = smul.addr %s181, 256
        %s183 = scalar_lea.vmem [#allocation2], %s182
        // Predicated region
        $region33: #{tpu_custom_call.1} parent=31 // pred_check
          %p184 = pneg %p42
        $region34: #{tpu_custom_call.1} parent=31 // pred_check_branch
          %186 = sbr.rel (%p184) target = $region36
        $region35: #{tpu_custom_call.1} parent=31 // pred_region
          %187 = dma.done %s180, 4096
        $region36: #{tpu_custom_call.1} parent=31 // pred_fallthru
          _
        // Predicated region
        $region37: #{tpu_custom_call.1} parent=31 // pred_check
          %p188 = pneg %p63
        $region38: #{tpu_custom_call.1} parent=31 // pred_check_branch
          %190 = sbr.rel (%p188) target = $region40
        $region39: #{tpu_custom_call.1} parent=31 // pred_region
          %191 = dma.done [#allocation6], 16
        $region40: #{tpu_custom_call.1} parent=31 // pred_fallthru
          _
        // Predicated region
        $region41: #{tpu_custom_call.1} parent=31 // pred_check
          %p192 = pneg %p84
        $region42: #{tpu_custom_call.1} parent=31 // pred_check_branch
          %194 = sbr.rel (%p192) target = $region44
        $region43: #{tpu_custom_call.1} parent=31 // pred_region
          %195 = dma.done [#allocation6], 16
        $region44: #{tpu_custom_call.1} parent=31 // pred_fallthru
          _
        %s196 = sand.u32 %s29, 1
        %s197 = scalar_lea.sflag [#allocation3], %s196
        %s198 = sand.u32 %s29, 1
        %s199 = smul.addr %s198, 256
        %s200 = scalar_lea.vmem [#allocation2], %s199
        %p201 = pneg %p42
        %p202 = pneg %p39
        %p203 = pneg %p63
        %p204 = pneg %p60
        %p205 = pneg %p84
        %p206 = pneg %p81
        %p207 = pneg %p110
        %p208 = pneg %p107
        %s209 = sand.u32 %s97, 1
        %s210 = scalar_lea.sflag [#allocation4], %s209
        %s211 = sand.u32 %s97, 1
        %s212 = smul.addr %s211, 256
        %s213 = scalar_lea.vmem [#allocation8], %s212
        %v214 = vld [vmem:[%s183] sm:$0xff]
        %v215 = vld [vmem:[%s183 + $0x8] sm:$0xff]
        %v216 = vld [vmem:[%s183 + $0x10] sm:$0xff]
        %v217 = vld [vmem:[%s183 + $0x18] sm:$0xff]
        %v218 = vld [vmem:[%s183 + $0x20] sm:$0xff]
        %v219 = vld [vmem:[%s183 + $0x28] sm:$0xff]
        %v220 = vld [vmem:[%s183 + $0x30] sm:$0xff]
        %v221 = vld [vmem:[%s183 + $0x38] sm:$0xff]
        %v222 = vld [vmem:[%s183 + $0x40] sm:$0xff]
        %v223 = vld [vmem:[%s183 + $0x48] sm:$0xff]
        %v224 = vld [vmem:[%s183 + $0x50] sm:$0xff]
        %v225 = vld [vmem:[%s183 + $0x58] sm:$0xff]
        %v226 = vld [vmem:[%s183 + $0x60] sm:$0xff]
        %v227 = vld [vmem:[%s183 + $0x68] sm:$0xff]
        %v228 = vld [vmem:[%s183 + $0x70] sm:$0xff]
        %v229 = vld [vmem:[%s183 + $0x78] sm:$0xff]
        %v230 = vld [vmem:[%s183 + $0x80] sm:$0xff]
        %v231 = vld [vmem:[%s183 + $0x88] sm:$0xff]
        %v232 = vld [vmem:[%s183 + $0x90] sm:$0xff]
        %v233 = vld [vmem:[%s183 + $0x98] sm:$0xff]
        %v234 = vld [vmem:[%s183 + $0xa0] sm:$0xff]
        %v235 = vld [vmem:[%s183 + $0xa8] sm:$0xff]
        %v236 = vld [vmem:[%s183 + $0xb0] sm:$0xff]
        %v237 = vld [vmem:[%s183 + $0xb8] sm:$0xff]
        %v238 = vld [vmem:[%s183 + $0xc0] sm:$0xff]
        %v239 = vld [vmem:[%s183 + $0xc8] sm:$0xff]
        %v240 = vld [vmem:[%s183 + $0xd0] sm:$0xff]
        %v241 = vld [vmem:[%s183 + $0xd8] sm:$0xff]
        %v242 = vld [vmem:[%s183 + $0xe0] sm:$0xff]
        %v243 = vld [vmem:[%s183 + $0xe8] sm:$0xff]
        %v244 = vld [vmem:[%s183 + $0xf0] sm:$0xff]
        %v245 = vld [vmem:[%s183 + $0xf8] sm:$0xff]
        %v246 = vld [vmem:[#allocation5] sm:$0x1]
        %v248 = vlaneseq
        %v249 = vshrl.u32 %v248, 7
        %v250 = vsub.s32 0, %v249
        %v251 = vrot.slane %v246, %v250
        %v253 = vmul.f32 %v214, %v251
        %v254 = vmul.f32 %v215, %v251
        %v255 = vmul.f32 %v216, %v251
        %v256 = vmul.f32 %v217, %v251
        %v257 = vmul.f32 %v218, %v251
        %v258 = vmul.f32 %v219, %v251
        %v259 = vmul.f32 %v220, %v251
        %v260 = vmul.f32 %v221, %v251
        %v261 = vmul.f32 %v222, %v251
        %v262 = vmul.f32 %v223, %v251
        %v263 = vmul.f32 %v224, %v251
        %v264 = vmul.f32 %v225, %v251
        %v265 = vmul.f32 %v226, %v251
        %v266 = vmul.f32 %v227, %v251
        %v267 = vmul.f32 %v228, %v251
        %v268 = vmul.f32 %v229, %v251
        %v269 = vmul.f32 %v230, %v251
        %v270 = vmul.f32 %v231, %v251
        %v271 = vmul.f32 %v232, %v251
        %v272 = vmul.f32 %v233, %v251
        %v273 = vmul.f32 %v234, %v251
        %v274 = vmul.f32 %v235, %v251
        %v275 = vmul.f32 %v236, %v251
        %v276 = vmul.f32 %v237, %v251
        %v277 = vmul.f32 %v238, %v251
        %v278 = vmul.f32 %v239, %v251
        %v279 = vmul.f32 %v240, %v251
        %v280 = vmul.f32 %v241, %v251
        %v281 = vmul.f32 %v242, %v251
        %v282 = vmul.f32 %v243, %v251
        %v283 = vmul.f32 %v244, %v251
        %v284 = vmul.f32 %v245, %v251
        %v285 = vld [vmem:[#allocation7] sm:$0x1]
        %v287 = vlaneseq
        %v288 = vshrl.u32 %v287, 7
        %v289 = vsub.s32 0, %v288
        %v290 = vrot.slane %v285, %v289
        %v292 = vadd.f32 %v253, %v290
        %v293 = vadd.f32 %v254, %v290
        %v294 = vadd.f32 %v255, %v290
        %v295 = vadd.f32 %v256, %v290
        %v296 = vadd.f32 %v257, %v290
        %v297 = vadd.f32 %v258, %v290
        %v298 = vadd.f32 %v259, %v290
        %v299 = vadd.f32 %v260, %v290
        %v300 = vadd.f32 %v261, %v290
        %v301 = vadd.f32 %v262, %v290
        %v302 = vadd.f32 %v263, %v290
        %v303 = vadd.f32 %v264, %v290
        %v304 = vadd.f32 %v265, %v290
        %v305 = vadd.f32 %v266, %v290
        %v306 = vadd.f32 %v267, %v290
        %v307 = vadd.f32 %v268, %v290
        %v308 = vadd.f32 %v269, %v290
        %v309 = vadd.f32 %v270, %v290
        %v310 = vadd.f32 %v271, %v290
        %v311 = vadd.f32 %v272, %v290
        %v312 = vadd.f32 %v273, %v290
        %v313 = vadd.f32 %v274, %v290
        %v314 = vadd.f32 %v275, %v290
        %v315 = vadd.f32 %v276, %v290
        %v316 = vadd.f32 %v277, %v290
        %v317 = vadd.f32 %v278, %v290
        %v318 = vadd.f32 %v279, %v290
        %v319 = vadd.f32 %v280, %v290
        %v320 = vadd.f32 %v281, %v290
        %v321 = vadd.f32 %v282, %v290
        %v322 = vadd.f32 %v283, %v290
        %v323 = vadd.f32 %v284, %v290
        %vm324 = vcmask 23552
        %325 = vst.msk [vmem:[%s213] sm:$0xff] %vm324, %v292
        %326 = vst.msk [vmem:[%s213 + $0x8] sm:$0xff] %vm324, %v293
        %327 = vst.msk [vmem:[%s213 + $0x10] sm:$0xff] %vm324, %v294
        %328 = vst.msk [vmem:[%s213 + $0x18] sm:$0xff] %vm324, %v295
        %329 = vst.msk [vmem:[%s213 + $0x20] sm:$0xff] %vm324, %v296
        %330 = vst.msk [vmem:[%s213 + $0x28] sm:$0xff] %vm324, %v297
        %331 = vst.msk [vmem:[%s213 + $0x30] sm:$0xff] %vm324, %v298
        %332 = vst.msk [vmem:[%s213 + $0x38] sm:$0xff] %vm324, %v299
        %333 = vst.msk [vmem:[%s213 + $0x40] sm:$0xff] %vm324, %v300
        %334 = vst.msk [vmem:[%s213 + $0x48] sm:$0xff] %vm324, %v301
        %335 = vst.msk [vmem:[%s213 + $0x50] sm:$0xff] %vm324, %v302
        %336 = vst.msk [vmem:[%s213 + $0x58] sm:$0xff] %vm324, %v303
        %337 = vst.msk [vmem:[%s213 + $0x60] sm:$0xff] %vm324, %v304
        %338 = vst.msk [vmem:[%s213 + $0x68] sm:$0xff] %vm324, %v305
        %339 = vst.msk [vmem:[%s213 + $0x70] sm:$0xff] %vm324, %v306
        %340 = vst.msk [vmem:[%s213 + $0x78] sm:$0xff] %vm324, %v307
        %341 = vst.msk [vmem:[%s213 + $0x80] sm:$0xff] %vm324, %v308
        %342 = vst.msk [vmem:[%s213 + $0x88] sm:$0xff] %vm324, %v309
        %343 = vst.msk [vmem:[%s213 + $0x90] sm:$0xff] %vm324, %v310
        %344 = vst.msk [vmem:[%s213 + $0x98] sm:$0xff] %vm324, %v311
        %345 = vst.msk [vmem:[%s213 + $0xa0] sm:$0xff] %vm324, %v312
        %346 = vst.msk [vmem:[%s213 + $0xa8] sm:$0xff] %vm324, %v313
        %347 = vst.msk [vmem:[%s213 + $0xb0] sm:$0xff] %vm324, %v314
        %348 = vst.msk [vmem:[%s213 + $0xb8] sm:$0xff] %vm324, %v315
        %349 = vst.msk [vmem:[%s213 + $0xc0] sm:$0xff] %vm324, %v316
        %350 = vst.msk [vmem:[%s213 + $0xc8] sm:$0xff] %vm324, %v317
        %351 = vst.msk [vmem:[%s213 + $0xd0] sm:$0xff] %vm324, %v318
        %352 = vst.msk [vmem:[%s213 + $0xd8] sm:$0xff] %vm324, %v319
        %353 = vst.msk [vmem:[%s213 + $0xe0] sm:$0xff] %vm324, %v320
        %354 = vst.msk [vmem:[%s213 + $0xe8] sm:$0xff] %vm324, %v321
        %355 = vst.msk [vmem:[%s213 + $0xf0] sm:$0xff] %vm324, %v322
        %356 = vst.msk [vmem:[%s213 + $0xf8] sm:$0xff] %vm324, %v323
        %s357 = sand.u32 %s97, 1
        %s358 = scalar_lea.sflag [#allocation4], %s357
        %s359 = sand.u32 %s97, 1
        %s360 = smul.addr %s359, 256
        %s361 = scalar_lea.vmem [#allocation8], %s360
        // Predicated region
        $region45: #{tpu_custom_call.1} parent=31 // pred_check
          %p362 = pneg %p107
        $region46: #{tpu_custom_call.1} parent=31 // pred_check_branch
          %364 = sbr.rel (%p362) target = $region48
        $region47: #{tpu_custom_call.1} parent=31 // pred_region
          %s366 = ssub.s32 4096, 4096
          %367 = vsyncadd %s358, %s366
          %s368 = smul.addr %s21, 32
          %s369 = smul.addr %s368, 128
          %s370 = scalar_lea.hbm %s3, %s369
          %s371 = sshll.u32 %s361, 4
          %s372 = int_to_ptr.vmem [resolvable:$true] %s371
          %377 = dma.vmem_to_hbm [thread:$0]  %s372, 4096, %s370, %s358, 128, 128, 8
        $region48: #{tpu_custom_call.1} parent=31 // pred_fallthru
          _
      $region32: #{tpu_custom_call.1} parent=5 // pred_fallthru
        _
      %p378 = scmp.le.s32.totalorder 2, %s16
      // Predicated region
      $region49: #{tpu_custom_call.1} parent=5 // pred_check
        %p379 = pneg %p378
      $region50: #{tpu_custom_call.1} parent=5 // pred_check_branch
        %381 = sbr.rel (%p379) target = $region52
      $region51: #{tpu_custom_call.1} parent=5 // pred_region
        %s382 = ssub.s32 %s16, 2
        // Predicated region
        $region53: #{tpu_custom_call.1} parent=51 // pred_check
          %p383 = pneg %p113
        $region54: #{tpu_custom_call.1} parent=51 // pred_check_branch
          %385 = sbr.rel (%p383) target = $region56
        $region55: #{tpu_custom_call.1} parent=51 // pred_region
          %s386 = sand.u32 %s98, 1
          %s387 = scalar_lea.sflag [#allocation4], %s386
          %s388 = sand.u32 %s98, 1
          %s389 = smul.addr %s388, 256
          %s390 = scalar_lea.vmem [#allocation8], %s389
          %391 = dma.done %s387, 4096
        $region56: #{tpu_custom_call.1} parent=51 // pred_fallthru
          _
      $region52: #{tpu_custom_call.1} parent=5 // pred_fallthru
        _
    $region6: #{tpu_custom_call.1} parent=1 // loop_footer
      %s20 = sadd.s32 1, %s16
    $region7: #{tpu_custom_call.1} parent=1 // loop_footer_branch
      %15 = sbr.rel target = $region3
    $region8: #{tpu_custom_call.1} parent=1 // loop_exit
      _
    %392 = vsyncpa [#allocation3], 1
    %s393 = scalar_lea.sflag [#allocation3], 1
    %394 = vsyncpa %s393, 1
    %395 = vsyncpa [#allocation6], 1
    %396 = vsyncpa [#allocation4], 1
    %s397 = scalar_lea.sflag [#allocation4], 1
    %398 = vsyncpa %s397, 1

</llo_original>
